<compile_context>
chip_gen: v5e
topology: v5e:2x2
jax: 0.10.0
libtpu: 0.0.40
codegen_flags: <defaults>
</compile_context>

<pallas_src>
import jax
import jax.numpy as jnp
from jax import lax
from jax.experimental import pallas as pl
from jax.experimental.pallas import tpu as pltpu

# ----- module / test configuration: Head(head_size=16, n_embd=48) -----
B = 2
T = 16
N_EMBD = 48
HEAD_SIZE = 16


def head_kernel(x_ref, wq_ref, wk_ref, wv_ref, out_ref):
    """Single self-attention head; whole (B, T, C) batch in one invocation.

    x_ref          : (B, T, C)   f32, VMEM
    wq/wk/wv_ref   : (C, HS)     f32, VMEM
    out_ref        : (B, T, HS)  f32, VMEM
    """
    b, t, c = x_ref.shape
    hs = out_ref.shape[-1]
    scale = float(c) ** -0.5  # trace-time constant

    # Collapse leading dims (layout-free) and run three separate MXU projections.
    # Each result starts at lane offset 0 -> no lane-unaligned slicing downstream.
    x2d = x_ref[...].reshape(b * t, c)
    q = jnp.dot(x2d, wq_ref[...], preferred_element_type=jnp.float32) * scale
    k = jnp.dot(x2d, wk_ref[...], preferred_element_type=jnp.float32)
    v = jnp.dot(x2d, wv_ref[...], preferred_element_type=jnp.float32)

    # Unroll the tiny batch dim: plain 2-D matmuls with clean layouts.
    # Leading-dim slices at multiples of T=16 are sublane-aligned views.
    for bi in range(b):
        qb = q[bi * t:(bi + 1) * t, :]
        kb = k[bi * t:(bi + 1) * t, :]
        vb = v[bi * t:(bi + 1) * t, :]

        # scores = q @ k^T : contract last axes of both operands (no transpose).
        s = lax.dot_general(qb, kb, (((1,), (1,)), ((), ())),
                            preferred_element_type=jnp.float32)

        # Row-wise softmax over the key axis, numerically stabilized.
        s = s - jnp.max(s, axis=-1, keepdims=True)
        p = jnp.exp(s)
        denom = jnp.sum(p, axis=-1, keepdims=True)
        p = p * pl.reciprocal(denom, approx=False)
        # TODO(synk): nn.Dropout on attention weights is identity (eval-mode semantics).

        out_ref[bi, :, :] = jnp.dot(p, vb, preferred_element_type=jnp.float32)


def head_forward(x, wq, wk, wv):
    """x: (B, T, C) f32; wq/wk/wv: (C, HS) f32. Returns (B, T, HS) f32."""
    Bv, Tv, C = x.shape
    hs = wq.shape[1]

    flops = 2 * Bv * Tv * C * 3 * hs + 4 * Bv * Tv * Tv * hs
    bytes_accessed = 4 * (x.size + wq.size + wk.size + wv.size + Bv * Tv * hs)

    vmem = pl.BlockSpec(memory_space=pltpu.MemorySpace.VMEM)
    return pl.pallas_call(
        head_kernel,
        out_shape=jax.ShapeDtypeStruct((Bv, Tv, hs), jnp.float32),
        in_specs=[vmem, vmem, vmem, vmem],
        out_specs=vmem,
        cost_estimate=pl.CostEstimate(
            flops=flops,
            transcendentals=Bv * Tv * Tv,
            bytes_accessed=bytes_accessed),
    )(x.astype(jnp.float32), wq.astype(jnp.float32),
      wk.astype(jnp.float32), wv.astype(jnp.float32))


def reference(x, wq, wk, wv):
    """Pure-JAX mirror of the PyTorch Head.forward (eval mode, dropout=identity)."""
    C = x.shape[-1]
    q = x @ wq
    k = x @ wk
    v = x @ wv
    wei = jnp.einsum("btd,bsd->bts", q, k) * (C ** -0.5)
    wei = jax.nn.softmax(wei, axis=-1)
    return jnp.einsum("bts,bsd->btd", wei, v)


if __name__ == "__main__":
    key = jax.random.PRNGKey(0)
    kx, kq, kk, kv = jax.random.split(key, 4)

    x = jax.random.normal(kx, (B, T, N_EMBD), jnp.float32)
    w_scale = 1.0 / jnp.sqrt(jnp.float32(N_EMBD))
    wq = jax.random.normal(kq, (N_EMBD, HEAD_SIZE), jnp.float32) * w_scale
    wk = jax.random.normal(kk, (N_EMBD, HEAD_SIZE), jnp.float32) * w_scale
    wv = jax.random.normal(kv, (N_EMBD, HEAD_SIZE), jnp.float32) * w_scale

    out = jax.block_until_ready(head_forward(x, wq, wk, wv))
    ref = jax.block_until_ready(reference(x, wq, wk, wv))

    assert out.shape == (B, T, HEAD_SIZE)
    assert jnp.allclose(out, ref, rtol=1e-4, atol=1e-4), (out, ref)
    print("KERNEL_OK")
</pallas_src>

<mosaic_0001>
module attributes {stable_mosaic.version = 11 : i64} {
  func.func @head_kernel(%arg0: memref<2x16x48xf32, #tpu.memory_space<vmem>>, %arg1: memref<48x16xf32, #tpu.memory_space<vmem>>, %arg2: memref<48x16xf32, #tpu.memory_space<vmem>>, %arg3: memref<48x16xf32, #tpu.memory_space<vmem>>, %arg4: memref<2x16x16xf32, #tpu.memory_space<vmem>>) attributes {dimension_semantics = [], scalar_prefetch = 0 : i64, scratch_operands = 0 : i64, tpu.core_type = #tpu.core_type<tc>} {
    %c0 = arith.constant 0 : index
    %c0_0 = arith.constant 0 : index
    %c0_1 = arith.constant 0 : index
    %0 = vector.load %arg0[%c0, %c0_0, %c0_1] : memref<2x16x48xf32, #tpu.memory_space<vmem>>, vector<2x16x48xf32>
    %1 = vector.shape_cast %0 : vector<2x16x48xf32> to vector<32x48xf32>
    %c0_2 = arith.constant 0 : index
    %c0_3 = arith.constant 0 : index
    %2 = vector.load %arg1[%c0_2, %c0_3] : memref<48x16xf32, #tpu.memory_space<vmem>>, vector<48x16xf32>
    %cst = arith.constant dense<0.000000e+00> : vector<32x16xf32>
    %3 = tpu.matmul %1, %2, %cst {dimension_numbers = #tpu.dot_dimension_numbers<[1], [0], [0], [1], [0, 0, 1, 1], [], []>} : vector<32x48xf32>, vector<48x16xf32>, vector<32x16xf32> -> vector<32x16xf32>
    %cst_4 = arith.constant 0.144337565 : f32
    %4 = vector.broadcast %cst_4 : f32 to vector<32x16xf32>
    %5 = arith.mulf %3, %4 : vector<32x16xf32>
    %c0_5 = arith.constant 0 : index
    %c0_6 = arith.constant 0 : index
    %6 = vector.load %arg2[%c0_5, %c0_6] : memref<48x16xf32, #tpu.memory_space<vmem>>, vector<48x16xf32>
    %cst_7 = arith.constant dense<0.000000e+00> : vector<32x16xf32>
    %7 = tpu.matmul %1, %6, %cst_7 {dimension_numbers = #tpu.dot_dimension_numbers<[1], [0], [0], [1], [0, 0, 1, 1], [], []>} : vector<32x48xf32>, vector<48x16xf32>, vector<32x16xf32> -> vector<32x16xf32>
    %c0_8 = arith.constant 0 : index
    %c0_9 = arith.constant 0 : index
    %8 = vector.load %arg3[%c0_8, %c0_9] : memref<48x16xf32, #tpu.memory_space<vmem>>, vector<48x16xf32>
    %cst_10 = arith.constant dense<0.000000e+00> : vector<32x16xf32>
    %9 = tpu.matmul %1, %8, %cst_10 {dimension_numbers = #tpu.dot_dimension_numbers<[1], [0], [0], [1], [0, 0, 1, 1], [], []>} : vector<32x48xf32>, vector<48x16xf32>, vector<32x16xf32> -> vector<32x16xf32>
    %10 = vector.extract_strided_slice %5 {offsets = [0, 0], sizes = [16, 16], strides = [1, 1]} : vector<32x16xf32> to vector<16x16xf32>
    %11 = vector.extract_strided_slice %7 {offsets = [0, 0], sizes = [16, 16], strides = [1, 1]} : vector<32x16xf32> to vector<16x16xf32>
    %12 = vector.extract_strided_slice %9 {offsets = [0, 0], sizes = [16, 16], strides = [1, 1]} : vector<32x16xf32> to vector<16x16xf32>
    %cst_11 = arith.constant dense<0.000000e+00> : vector<16x16xf32>
    %13 = tpu.matmul %10, %11, %cst_11 {dimension_numbers = #tpu.dot_dimension_numbers<[1], [1], [0], [0], [0, 0, 1, 0], [], []>} : vector<16x16xf32>, vector<16x16xf32>, vector<16x16xf32> -> vector<16x16xf32>
    %cst_12 = arith.constant dense<0xFF800000> : vector<16xf32>
    %14 = vector.multi_reduction <maximumf>, %13, %cst_12 [1] : vector<16x16xf32> to vector<16xf32>
    %15 = vector.shape_cast %14 : vector<16xf32> to vector<16x1xf32>
    %16 = vector.broadcast %15 : vector<16x1xf32> to vector<16x16xf32>
    %17 = arith.subf %13, %16 : vector<16x16xf32>
    %18 = math.exp %17 : vector<16x16xf32>
    %cst_13 = arith.constant dense<0.000000e+00> : vector<16xf32>
    %19 = vector.multi_reduction <add>, %18, %cst_13 [1] : vector<16x16xf32> to vector<16xf32>
    %20 = vector.shape_cast %19 : vector<16xf32> to vector<16x1xf32>
    %21 = tpu.reciprocal %20 : vector<16x1xf32> -> vector<16x1xf32>
    %22 = vector.broadcast %21 : vector<16x1xf32> to vector<16x16xf32>
    %23 = arith.mulf %18, %22 : vector<16x16xf32>
    %cst_14 = arith.constant dense<0.000000e+00> : vector<16x16xf32>
    %24 = tpu.matmul %23, %12, %cst_14 {dimension_numbers = #tpu.dot_dimension_numbers<[1], [0], [0], [1], [0, 0, 1, 1], [], []>} : vector<16x16xf32>, vector<16x16xf32>, vector<16x16xf32> -> vector<16x16xf32>
    %c0_15 = arith.constant 0 : index
    %c0_16 = arith.constant 0 : index
    %c0_17 = arith.constant 0 : index
    %25 = vector.load %arg4[%c0_15, %c0_16, %c0_17] : memref<2x16x16xf32, #tpu.memory_space<vmem>>, vector<1x16x16xf32>
    %26 = vector.shape_cast %25 : vector<1x16x16xf32> to vector<16x16xf32>
    %27 = vector.shape_cast %24 : vector<16x16xf32> to vector<1x16x16xf32>
    tpu.vector_store %arg4[%c0_15, %c0_16, %c0_17], %27 {strides = array<i32>} : memref<2x16x16xf32, #tpu.memory_space<vmem>>, vector<1x16x16xf32>,
    %28 = vector.extract_strided_slice %5 {offsets = [16, 0], sizes = [16, 16], strides = [1, 1]} : vector<32x16xf32> to vector<16x16xf32>
    %29 = vector.extract_strided_slice %7 {offsets = [16, 0], sizes = [16, 16], strides = [1, 1]} : vector<32x16xf32> to vector<16x16xf32>
    %30 = vector.extract_strided_slice %9 {offsets = [16, 0], sizes = [16, 16], strides = [1, 1]} : vector<32x16xf32> to vector<16x16xf32>
    %cst_18 = arith.constant dense<0.000000e+00> : vector<16x16xf32>
    %31 = tpu.matmul %28, %29, %cst_18 {dimension_numbers = #tpu.dot_dimension_numbers<[1], [1], [0], [0], [0, 0, 1, 0], [], []>} : vector<16x16xf32>, vector<16x16xf32>, vector<16x16xf32> -> vector<16x16xf32>
    %cst_19 = arith.constant dense<0xFF800000> : vector<16xf32>
    %32 = vector.multi_reduction <maximumf>, %31, %cst_19 [1] : vector<16x16xf32> to vector<16xf32>
    %33 = vector.shape_cast %32 : vector<16xf32> to vector<16x1xf32>
    %34 = vector.broadcast %33 : vector<16x1xf32> to vector<16x16xf32>
    %35 = arith.subf %31, %34 : vector<16x16xf32>
    %36 = math.exp %35 : vector<16x16xf32>
    %cst_20 = arith.constant dense<0.000000e+00> : vector<16xf32>
    %37 = vector.multi_reduction <add>, %36, %cst_20 [1] : vector<16x16xf32> to vector<16xf32>
    %38 = vector.shape_cast %37 : vector<16xf32> to vector<16x1xf32>
    %39 = tpu.reciprocal %38 : vector<16x1xf32> -> vector<16x1xf32>
    %40 = vector.broadcast %39 : vector<16x1xf32> to vector<16x16xf32>
    %41 = arith.mulf %36, %40 : vector<16x16xf32>
    %cst_21 = arith.constant dense<0.000000e+00> : vector<16x16xf32>
    %42 = tpu.matmul %41, %30, %cst_21 {dimension_numbers = #tpu.dot_dimension_numbers<[1], [0], [0], [1], [0, 0, 1, 1], [], []>} : vector<16x16xf32>, vector<16x16xf32>, vector<16x16xf32> -> vector<16x16xf32>
    %c1 = arith.constant 1 : index
    %c0_22 = arith.constant 0 : index
    %c0_23 = arith.constant 0 : index
    %43 = vector.load %arg4[%c1, %c0_22, %c0_23] : memref<2x16x16xf32, #tpu.memory_space<vmem>>, vector<1x16x16xf32>
    %44 = vector.shape_cast %43 : vector<1x16x16xf32> to vector<16x16xf32>
    %45 = vector.shape_cast %42 : vector<16x16xf32> to vector<1x16x16xf32>
    tpu.vector_store %arg4[%c1, %c0_22, %c0_23], %45 {strides = array<i32>} : memref<2x16x16xf32, #tpu.memory_space<vmem>>, vector<1x16x16xf32>,
    return
  }
}

</mosaic_0001>

<llo_original>
// kernel: tpu_custom_call.1
$region0: #{tpu_custom_call.1}
  #allocation0 [shape = 'u32[]', space=smem, size = 0x4, offset = 0x4, fixed_abs, tag = 'smem constant byte address 0x4 - core index']
  #allocation1 [shape = 'u32[72,128]{1,0:T(1,128)}', space=vmem, size = 0x9000, scoped, tag = 'internal scratch']
  %s0 = inlined_call_operand.vmem [shape: f32[2,16,48], index: 0, kind: input, shape index: {}]
  %s1 = inlined_call_operand.vmem [shape: f32[48,16], index: 1, kind: input, shape index: {}]
  %s2 = inlined_call_operand.vmem [shape: f32[48,16], index: 2, kind: input, shape index: {}]
  %s3 = inlined_call_operand.vmem [shape: f32[48,16], index: 3, kind: input, shape index: {}]
  %s4 = inlined_call_operand.hbm [shape: f32[2,16,16], index: 4, kind: output, shape index: {}]
  %s5 = sld [smem:[#allocation0]]
  $region26: #{tpu_custom_call.1} parent=0
    _
  %s7 = ssub.s32 1, %s5
  %s8 = scalar_select 0, %s7, %s5
  $region1: #{tpu_custom_call.1} parent=0
    #allocation2 [shape = 'u8[16384]{0}', space=vmem, size = 0x4000, scoped, tag = 'output window, operand 0, single buffered']
    #allocation3 [shape = 's32[1]{0}', space=sflag, size = 0x4, scoped, tag = 'scoped memory for tpu_custom_call.1']
    %9 = vsyncpa [#allocation3], 0
    // Predicated region
    $region2: #{tpu_custom_call.1} parent=1 // pred_check
      _
    $region3: #{tpu_custom_call.1} parent=1 // pred_check_branch
      %11 = sbr.rel (0) target = $region5
    $region4: #{tpu_custom_call.1} parent=1 // pred_region
      _
    $region5: #{tpu_custom_call.1} parent=1 // pred_fallthru
      _
    // Predicated region
    $region6: #{tpu_custom_call.1} parent=1 // pred_check
      _
    $region7: #{tpu_custom_call.1} parent=1 // pred_check_branch
      %13 = sbr.rel (0) target = $region9
    $region8: #{tpu_custom_call.1} parent=1 // pred_region
      _
    $region9: #{tpu_custom_call.1} parent=1 // pred_fallthru
      _
    // Predicated region
    $region10: #{tpu_custom_call.1} parent=1 // pred_check
      _
    $region11: #{tpu_custom_call.1} parent=1 // pred_check_branch
      %15 = sbr.rel (0) target = $region13
    $region12: #{tpu_custom_call.1} parent=1 // pred_region
      _
    $region13: #{tpu_custom_call.1} parent=1 // pred_fallthru
      _
    // Predicated region
    $region14: #{tpu_custom_call.1} parent=1 // pred_check
      _
    $region15: #{tpu_custom_call.1} parent=1 // pred_check_branch
      %17 = sbr.rel (0) target = $region17
    $region16: #{tpu_custom_call.1} parent=1 // pred_region
      _
    $region17: #{tpu_custom_call.1} parent=1 // pred_fallthru
      _
    %v18 = vld [vmem:[%s0] sm:$0xff]
    %v19 = vld [vmem:[%s0 + $0x8] sm:$0xff]
    %v20 = vld [vmem:[%s0 + $0x10] sm:$0xff]
    %v21 = vld [vmem:[%s0 + $0x18] sm:$0xff]
    %v22 = vld [vmem:[%s1] sm:$0xff]
    %v23 = vld [vmem:[%s1 + $0x8] sm:$0xff]
    %v24 = vld [vmem:[%s1 + $0x10] sm:$0xff]
    %v25 = vld [vmem:[%s1 + $0x18] sm:$0xff]
    %v26 = vld [vmem:[%s1 + $0x20] sm:$0xff]
    %v27 = vld [vmem:[%s1 + $0x28] sm:$0xff]
    %vm28 = vcmask 392192
    %v30 = vsel %vm28, %v18, 0
    %v33 = vsel %vm28, %v19, 0
    %v36 = vsel %vm28, %v20, 0
    %v39 = vsel %vm28, %v21, 0
    %41 = vmatpush.msra.mxu0 0.0
    %42 = vmatpush.msra.mxu0 0.0
    %43 = vmatpush.msra.mxu0 0.0
    %44 = vmatpush.msra.mxu0 0.0
    %45 = vmatpush.msra.mxu0 0.0
    %46 = vmatpush.msra.mxu0 0.0
    %47 = vmatpush.msra.mxu0 0.0
    %48 = vmatpush.msra.mxu0 0.0
    %49 = vmatpush.msra.mxu0 0.0
    %50 = vmatpush.msra.mxu0 0.0
    %51 = vmatpush.msra.mxu0 %v27
    %52 = vmatpush.msra.mxu0 %v26
    %53 = vmatpush.msra.mxu0 %v25
    %54 = vmatpush.msra.mxu0 %v24
    %55 = vmatpush.msra.mxu0 %v23
    %56 = vmatpush.msra.mxu0 %v22
    %57 = vmatmul.f32.gmra.mxu0 %v30
    %v58 = vpop.f32.mrf.mxu0
    %v59 = vadd.f32 0.0, %v58
    %60 = vmatmul.f32.gmra.mxu0 %v33
    %v61 = vpop.f32.mrf.mxu0
    %v62 = vadd.f32 0.0, %v61
    %63 = vmatmul.f32.gmra.mxu0 %v36
    %v64 = vpop.f32.mrf.mxu0
    %v65 = vadd.f32 0.0, %v64
    %66 = vmatmul.f32.gmra.mxu0 %v39
    %v67 = vpop.f32.mrf.mxu0
    %v68 = vadd.f32 0.0, %v67
    %69 = vdwg.mxu0
    %v70 = vmul.f32 %v59, 0.14433756
    %v71 = vmul.f32 %v62, 0.14433756
    %v72 = vmul.f32 %v65, 0.14433756
    %v73 = vmul.f32 %v68, 0.14433756
    %v74 = vld [vmem:[%s2] sm:$0xff]
    %v75 = vld [vmem:[%s2 + $0x8] sm:$0xff]
    %v76 = vld [vmem:[%s2 + $0x10] sm:$0xff]
    %v77 = vld [vmem:[%s2 + $0x18] sm:$0xff]
    %v78 = vld [vmem:[%s2 + $0x20] sm:$0xff]
    %v79 = vld [vmem:[%s2 + $0x28] sm:$0xff]
    %80 = vmatpush.msra.mxu0 0.0
    %81 = vmatpush.msra.mxu0 0.0
    %82 = vmatpush.msra.mxu0 0.0
    %83 = vmatpush.msra.mxu0 0.0
    %84 = vmatpush.msra.mxu0 0.0
    %85 = vmatpush.msra.mxu0 0.0
    %86 = vmatpush.msra.mxu0 0.0
    %87 = vmatpush.msra.mxu0 0.0
    %88 = vmatpush.msra.mxu0 0.0
    %89 = vmatpush.msra.mxu0 0.0
    %90 = vmatpush.msra.mxu0 %v79
    %91 = vmatpush.msra.mxu0 %v78
    %92 = vmatpush.msra.mxu0 %v77
    %93 = vmatpush.msra.mxu0 %v76
    %94 = vmatpush.msra.mxu0 %v75
    %95 = vmatpush.msra.mxu0 %v74
    %96 = vmatmul.f32.gmra.mxu0 %v30
    %v97 = vpop.f32.mrf.mxu0
    %v98 = vadd.f32 0.0, %v97
    %99 = vmatmul.f32.gmra.mxu0 %v33
    %v100 = vpop.f32.mrf.mxu0
    %v101 = vadd.f32 0.0, %v100
    %102 = vmatmul.f32.gmra.mxu0 %v36
    %v103 = vpop.f32.mrf.mxu0
    %v104 = vadd.f32 0.0, %v103
    %105 = vmatmul.f32.gmra.mxu0 %v39
    %v106 = vpop.f32.mrf.mxu0
    %v107 = vadd.f32 0.0, %v106
    %108 = vdwg.mxu0
    %v109 = vld [vmem:[%s3] sm:$0xff]
    %v110 = vld [vmem:[%s3 + $0x8] sm:$0xff]
    %v111 = vld [vmem:[%s3 + $0x10] sm:$0xff]
    %v112 = vld [vmem:[%s3 + $0x18] sm:$0xff]
    %v113 = vld [vmem:[%s3 + $0x20] sm:$0xff]
    %v114 = vld [vmem:[%s3 + $0x28] sm:$0xff]
    %115 = vmatpush.msra.mxu0 0.0
    %116 = vmatpush.msra.mxu0 0.0
    %117 = vmatpush.msra.mxu0 0.0
    %118 = vmatpush.msra.mxu0 0.0
    %119 = vmatpush.msra.mxu0 0.0
    %120 = vmatpush.msra.mxu0 0.0
    %121 = vmatpush.msra.mxu0 0.0
    %122 = vmatpush.msra.mxu0 0.0
    %123 = vmatpush.msra.mxu0 0.0
    %124 = vmatpush.msra.mxu0 0.0
    %125 = vmatpush.msra.mxu0 %v114
    %126 = vmatpush.msra.mxu0 %v113
    %127 = vmatpush.msra.mxu0 %v112
    %128 = vmatpush.msra.mxu0 %v111
    %129 = vmatpush.msra.mxu0 %v110
    %130 = vmatpush.msra.mxu0 %v109
    %131 = vmatmul.f32.gmra.mxu0 %v30
    %v132 = vpop.f32.mrf.mxu0
    %v133 = vadd.f32 0.0, %v132
    %134 = vmatmul.f32.gmra.mxu0 %v33
    %v135 = vpop.f32.mrf.mxu0
    %v136 = vadd.f32 0.0, %v135
    %137 = vmatmul.f32.gmra.mxu0 %v36
    %v138 = vpop.f32.mrf.mxu0
    %v139 = vadd.f32 0.0, %v138
    %140 = vmatmul.f32.gmra.mxu0 %v39
    %v141 = vpop.f32.mrf.mxu0
    %v142 = vadd.f32 0.0, %v141
    %143 = vdwg.mxu0
    %vm144 = vcmask 130048
    %v146 = vsel %vm144, %v70, 0
    %v149 = vsel %vm144, %v71, 0
    %v152 = vsel %vm144, %v98, 0
    %v155 = vsel %vm144, %v101, 0
    %157 = vmatpush.xpose.msra.mxu0 0.0
    %158 = vmatpush.xpose.msra.mxu0 0.0
    %159 = vmatpush.xpose.msra.mxu0 0.0
    %160 = vmatpush.xpose.msra.mxu0 0.0
    %161 = vmatpush.xpose.msra.mxu0 0.0
    %162 = vmatpush.xpose.msra.mxu0 0.0
    %163 = vmatpush.xpose.msra.mxu0 0.0
    %164 = vmatpush.xpose.msra.mxu0 0.0
    %165 = vmatpush.xpose.msra.mxu0 0.0
    %166 = vmatpush.xpose.msra.mxu0 0.0
    %167 = vmatpush.xpose.msra.mxu0 0.0
    %168 = vmatpush.xpose.msra.mxu0 0.0
    %169 = vmatpush.xpose.msra.mxu0 0.0
    %170 = vmatpush.xpose.msra.mxu0 0.0
    %171 = vmatpush.xpose.msra.mxu0 %v155
    %172 = vmatpush.xpose.msra.mxu0 %v152
    %173 = vmatmul.f32.gmra.mxu0 %v146
    %v174 = vpop.f32.mrf.mxu0
    %v175 = vadd.f32 0.0, %v174
    %176 = vmatmul.f32.gmra.mxu0 %v149
    %v177 = vpop.f32.mrf.mxu0
    %v178 = vadd.f32 0.0, %v177
    %179 = vdwg.mxu0
    %v180 = vsel %vm144, %v175, -inf
    %181 = vmax.xlane.f32.xlu0 %v180
    %v182 = vpop.xlane.xlu0 %181
    %v183 = vsel %vm144, %v178, -inf
    %184 = vmax.xlane.f32.xlu0 %v183
    %v185 = vpop.xlane.xlu0 %184
    %v186 = vsub.f32 %v175, %v182
    %v187 = vsub.f32 %v178, %v185
    %v188 = vmul.f32 %v186, 1.442695
    %v189 = vpow.pop %v188
    %v190 = vmul.f32 %v187, 1.442695
    %v191 = vpow.pop %v190
    %v192 = vsel %vm144, %v189, 0.0
    %193 = vadd.xlane.f32.xlu0 %v192
    %v194 = vpop.xlane.xlu0 %193
    %v195 = vsel %vm144, %v191, 0.0
    %196 = vadd.xlane.f32.xlu0 %v195
    %v197 = vpop.xlane.xlu0 %196
    %v198 = vrcp.pop %v194
    %v199 = vmul.f32 %v194, %v198
    %v200 = vsub.f32 1.0, %v199
    %v201 = vmul.f32 %v198, %v200
    %v202 = vadd.f32 %v198, %v201
    %vm203 = vweird.f32 %v194
    %vm204 = vweird.f32 %v198
    %vm205 = vmor %vm203, %vm204
    %v206 = vsel %vm205, %v198, %v202
    %v207 = vand.u32 2147483647, %v194
    %vm208 = vcmp.eq.f32.partialorder %v207, 8.507059e+37
    %v209 = vand.u32 %v194, 2147483648
    %v210 = vor.u32 1.1754944e-38, %v209
    %v211 = vsel %vm208, %v210, %v206
    %v212 = vrcp.pop %v197
    %v213 = vmul.f32 %v197, %v212
    %v214 = vsub.f32 1.0, %v213
    %v215 = vmul.f32 %v212, %v214
    %v216 = vadd.f32 %v212, %v215
    %vm217 = vweird.f32 %v197
    %vm218 = vweird.f32 %v212
    %vm219 = vmor %vm217, %vm218
    %v220 = vsel %vm219, %v212, %v216
    %v221 = vand.u32 2147483647, %v197
    %vm222 = vcmp.eq.f32.partialorder %v221, 8.507059e+37
    %v223 = vand.u32 %v197, 2147483648
    %v224 = vor.u32 1.1754944e-38, %v223
    %v225 = vsel %vm222, %v224, %v220
    %v226 = vmul.f32 %v189, %v211
    %v227 = vmul.f32 %v191, %v225
    %v229 = vsel %vm144, %v226, 0
    %v232 = vsel %vm144, %v227, 0
    %234 = vmatpush.msra.mxu0 0.0
    %235 = vmatpush.msra.mxu0 0.0
    %236 = vmatpush.msra.mxu0 0.0
    %237 = vmatpush.msra.mxu0 0.0
    %238 = vmatpush.msra.mxu0 0.0
    %239 = vmatpush.msra.mxu0 0.0
    %240 = vmatpush.msra.mxu0 0.0
    %241 = vmatpush.msra.mxu0 0.0
    %242 = vmatpush.msra.mxu0 0.0
    %243 = vmatpush.msra.mxu0 0.0
    %244 = vmatpush.msra.mxu0 0.0
    %245 = vmatpush.msra.mxu0 0.0
    %246 = vmatpush.msra.mxu0 0.0
    %247 = vmatpush.msra.mxu0 0.0
    %248 = vmatpush.msra.mxu0 %v136
    %249 = vmatpush.msra.mxu0 %v133
    %250 = vmatmul.f32.gmra.mxu0 %v229
    %v251 = vpop.f32.mrf.mxu0
    %v252 = vadd.f32 0.0, %v251
    %253 = vmatmul.f32.gmra.mxu0 %v232
    %v254 = vpop.f32.mrf.mxu0
    %v255 = vadd.f32 0.0, %v254
    %256 = vdwg.mxu0
    %257 = vst.msk [vmem:[#allocation2] sm:$0xff] %vm144, %v252
    %258 = vst.msk [vmem:[#allocation2 + $0x8] sm:$0xff] %vm144, %v255
    %v260 = vsel %vm144, %v72, 0
    %v263 = vsel %vm144, %v73, 0
    %v266 = vsel %vm144, %v104, 0
    %v269 = vsel %vm144, %v107, 0
    %271 = vmatpush.xpose.msra.mxu0 0.0
    %272 = vmatpush.xpose.msra.mxu0 0.0
    %273 = vmatpush.xpose.msra.mxu0 0.0
    %274 = vmatpush.xpose.msra.mxu0 0.0
    %275 = vmatpush.xpose.msra.mxu0 0.0
    %276 = vmatpush.xpose.msra.mxu0 0.0
    %277 = vmatpush.xpose.msra.mxu0 0.0
    %278 = vmatpush.xpose.msra.mxu0 0.0
    %279 = vmatpush.xpose.msra.mxu0 0.0
    %280 = vmatpush.xpose.msra.mxu0 0.0
    %281 = vmatpush.xpose.msra.mxu0 0.0
    %282 = vmatpush.xpose.msra.mxu0 0.0
    %283 = vmatpush.xpose.msra.mxu0 0.0
    %284 = vmatpush.xpose.msra.mxu0 0.0
    %285 = vmatpush.xpose.msra.mxu0 %v269
    %286 = vmatpush.xpose.msra.mxu0 %v266
    %287 = vmatmul.f32.gmra.mxu0 %v260
    %v288 = vpop.f32.mrf.mxu0
    %v289 = vadd.f32 0.0, %v288
    %290 = vmatmul.f32.gmra.mxu0 %v263
    %v291 = vpop.f32.mrf.mxu0
    %v292 = vadd.f32 0.0, %v291
    %293 = vdwg.mxu0
    %v294 = vsel %vm144, %v289, -inf
    %295 = vmax.xlane.f32.xlu0 %v294
    %v296 = vpop.xlane.xlu0 %295
    %v297 = vsel %vm144, %v292, -inf
    %298 = vmax.xlane.f32.xlu0 %v297
    %v299 = vpop.xlane.xlu0 %298
    %v300 = vsub.f32 %v289, %v296
    %v301 = vsub.f32 %v292, %v299
    %v302 = vmul.f32 %v300, 1.442695
    %v303 = vpow.pop %v302
    %v304 = vmul.f32 %v301, 1.442695
    %v305 = vpow.pop %v304
    %v306 = vsel %vm144, %v303, 0.0
    %307 = vadd.xlane.f32.xlu0 %v306
    %v308 = vpop.xlane.xlu0 %307
    %v309 = vsel %vm144, %v305, 0.0
    %310 = vadd.xlane.f32.xlu0 %v309
    %v311 = vpop.xlane.xlu0 %310
    %v312 = vrcp.pop %v308
    %v313 = vmul.f32 %v308, %v312
    %v314 = vsub.f32 1.0, %v313
    %v315 = vmul.f32 %v312, %v314
    %v316 = vadd.f32 %v312, %v315
    %vm317 = vweird.f32 %v308
    %vm318 = vweird.f32 %v312
    %vm319 = vmor %vm317, %vm318
    %v320 = vsel %vm319, %v312, %v316
    %v321 = vand.u32 2147483647, %v308
    %vm322 = vcmp.eq.f32.partialorder %v321, 8.507059e+37
    %v323 = vand.u32 %v308, 2147483648
    %v324 = vor.u32 1.1754944e-38, %v323
    %v325 = vsel %vm322, %v324, %v320
    %v326 = vrcp.pop %v311
    %v327 = vmul.f32 %v311, %v326
    %v328 = vsub.f32 1.0, %v327
    %v329 = vmul.f32 %v326, %v328
    %v330 = vadd.f32 %v326, %v329
    %vm331 = vweird.f32 %v311
    %vm332 = vweird.f32 %v326
    %vm333 = vmor %vm331, %vm332
    %v334 = vsel %vm333, %v326, %v330
    %v335 = vand.u32 2147483647, %v311
    %vm336 = vcmp.eq.f32.partialorder %v335, 8.507059e+37
    %v337 = vand.u32 %v311, 2147483648
    %v338 = vor.u32 1.1754944e-38, %v337
    %v339 = vsel %vm336, %v338, %v334
    %v340 = vmul.f32 %v303, %v325
    %v341 = vmul.f32 %v305, %v339
    %v343 = vsel %vm144, %v340, 0
    %v346 = vsel %vm144, %v341, 0
    %348 = vmatpush.msra.mxu0 0.0
    %349 = vmatpush.msra.mxu0 0.0
    %350 = vmatpush.msra.mxu0 0.0
    %351 = vmatpush.msra.mxu0 0.0
    %352 = vmatpush.msra.mxu0 0.0
    %353 = vmatpush.msra.mxu0 0.0
    %354 = vmatpush.msra.mxu0 0.0
    %355 = vmatpush.msra.mxu0 0.0
    %356 = vmatpush.msra.mxu0 0.0
    %357 = vmatpush.msra.mxu0 0.0
    %358 = vmatpush.msra.mxu0 0.0
    %359 = vmatpush.msra.mxu0 0.0
    %360 = vmatpush.msra.mxu0 0.0
    %361 = vmatpush.msra.mxu0 0.0
    %362 = vmatpush.msra.mxu0 %v142
    %363 = vmatpush.msra.mxu0 %v139
    %364 = vmatmul.f32.gmra.mxu0 %v343
    %v365 = vpop.f32.mrf.mxu0
    %v366 = vadd.f32 0.0, %v365
    %367 = vmatmul.f32.gmra.mxu0 %v346
    %v368 = vpop.f32.mrf.mxu0
    %v369 = vadd.f32 0.0, %v368
    %370 = vdwg.mxu0
    %s371 = scalar_lea.vmem [#allocation2], 16
    %372 = vst.msk [vmem:[%s371] sm:$0xff] %vm144, %v366
    %373 = vst.msk [vmem:[%s371 + $0x8] sm:$0xff] %vm144, %v369
    // Predicated region
    $region18: #{tpu_custom_call.1} parent=1 // pred_check
      _
    $region19: #{tpu_custom_call.1} parent=1 // pred_check_branch
      %375 = sbr.rel (0) target = $region21
    $region20: #{tpu_custom_call.1} parent=1 // pred_region
      %377 = vsyncadd [#allocation3], 0
      %s378 = sshll.u32 [#allocation2], 4
      %s379 = int_to_ptr.vmem [resolvable:$true] %s378
      %s380 = sshll.u32 %s4, 4
      %s381 = int_to_ptr.hbm [resolvable:$true] %s380
      %386 = dma.vmem_to_hbm [thread:$0]  %s379, 512, %s381, [#allocation3], 128, 128, 8
    $region21: #{tpu_custom_call.1} parent=1 // pred_fallthru
      _
    // Predicated region
    $region22: #{tpu_custom_call.1} parent=1 // pred_check
      _
    $region23: #{tpu_custom_call.1} parent=1 // pred_check_branch
      %388 = sbr.rel (0) target = $region25
    $region24: #{tpu_custom_call.1} parent=1 // pred_region
      %390 = dma.done [#allocation3], 512
    $region25: #{tpu_custom_call.1} parent=1 // pred_fallthru
      _
    %391 = vsyncpa [#allocation3], 1

</llo_original>
